<compile_context>
chip_gen: v7x
topology: tpu7x:2x2x1
jax: 0.10.0
libtpu: 0.0.40
codegen_flags: <defaults>
</compile_context>

<pallas_src>
import jax
import jax.numpy as jnp
from jax.experimental import pallas as pl
from jax.experimental.pallas import tpu as pltpu


def cf_kernel(uidx_ref, iidx_ref, ut_ref, it_ref, o_ref):
    # uidx_ref / iidx_ref: (1, TB) int32 index tiles in VMEM.
    # ut_ref: (F, n_users) f32 transposed user table, fully resident in VMEM.
    # it_ref: (F, n_items) f32 transposed item table, fully resident in VMEM.
    # o_ref : (1, TB) f32 lane-dense output tile.
    n_users = ut_ref.shape[1]
    n_items = it_ref.shape[1]
    tb = uidx_ref.shape[1]

    uidx = uidx_ref[...]                                   # (1, TB) int32
    iidx = iidx_ref[...]                                   # (1, TB) int32

    # One-hot selection matrices, batch along lanes (VPU compare + cast).
    u_oh = (jax.lax.broadcasted_iota(jnp.int32, (n_users, tb), 0)
            == uidx).astype(jnp.float32)                   # (n_users, TB)
    i_oh = (jax.lax.broadcasted_iota(jnp.int32, (n_items, tb), 0)
            == iidx).astype(jnp.float32)                   # (n_items, TB)

    # Gather TB embedding rows via the MXU: (F, n) @ (n, TB) -> (F, TB).
    u = jnp.dot(ut_ref[...], u_oh, preferred_element_type=jnp.float32)
    i = jnp.dot(it_ref[...], i_oh, preferred_element_type=jnp.float32)

    # dot[b] = sum_f u[f, b] * i[f, b] : VPU multiply + sublane reduce.
    dot = jnp.sum(u * i, axis=0, keepdims=True)            # (1, TB) lane-dense
    o_ref[...] = jax.nn.sigmoid(dot)                       # EUP + unmasked vst


def cf_forward(user_idx, item_idx, user_emb, item_emb, *, tb=128):
    """Pallas equivalent of CF.forward: sigmoid((u*i).sum(-1)), shape (B,)."""
    B = user_idx.shape[0]
    n_users, F = user_emb.shape
    n_items, F2 = item_emb.shape
    assert F == F2, "user/item embedding widths must match"

    num_tiles = max(1, pl.cdiv(B, tb))
    b_padded = num_tiles * tb
    pad = b_padded - B

    # Pad with index 0 (always a valid row); padded lanes are discarded below.
    uidx = jnp.pad(user_idx.astype(jnp.int32), (0, pad)).reshape(num_tiles, tb)
    iidx = jnp.pad(item_idx.astype(jnp.int32), (0, pad)).reshape(num_tiles, tb)

    # Transpose tables once in XLA so the in-kernel gather is a plain
    # (F, n) @ (n, TB) contraction with batch kept in the lane axis, and the
    # output tile stays lane-dense.
    u_t = user_emb.astype(jnp.float32).T                   # (F, n_users)
    i_t = item_emb.astype(jnp.float32).T                   # (F, n_items)

    out = pl.pallas_call(
        cf_kernel,
        out_shape=jax.ShapeDtypeStruct((num_tiles, tb), jnp.float32),
        grid=(num_tiles,),
        in_specs=[
            # Per-tile index blocks (lane-dense, auto-pipelined across tiles).
            pl.BlockSpec((1, tb), lambda t: (t, 0)),
            pl.BlockSpec((1, tb), lambda t: (t, 0)),
            # Small embedding tables: fully resident in VMEM, loaded once.
            pl.BlockSpec(memory_space=pltpu.MemorySpace.VMEM),
            pl.BlockSpec(memory_space=pltpu.MemorySpace.VMEM),
        ],
        # Each grid step owns its own lane-dense (1, TB) output tile.
        out_specs=pl.BlockSpec((1, tb), lambda t: (t, 0)),
        compiler_params=pltpu.CompilerParams(
            dimension_semantics=("parallel",)),
    )(uidx, iidx, u_t, i_t)

    return out.reshape(-1)[:B]


if __name__ == "__main__":
    # Deterministic synthetic parameters (nn.Embedding default init ~ N(0, 1)).
    n_users, n_items, n_factors = 16, 24, 128
    batch = 8

    key = jax.random.PRNGKey(0)
    k_u, k_i, k_uidx, k_iidx = jax.random.split(key, 4)

    user_emb = jax.random.normal(k_u, (n_users, n_factors), dtype=jnp.float32)
    item_emb = jax.random.normal(k_i, (n_items, n_factors), dtype=jnp.float32)

    user_idx = jax.random.randint(k_uidx, (batch,), 0, n_users, dtype=jnp.int32)
    item_idx = jax.random.randint(k_iidx, (batch,), 0, n_items, dtype=jnp.int32)

    out = cf_forward(user_idx, item_idx, user_emb, item_emb)
    out = jax.block_until_ready(out)

    # Pure-JAX reference check.
    u = user_emb[user_idx]
    i = item_emb[item_idx]
    ref = jax.nn.sigmoid(jnp.sum(u * i, axis=1))

    assert out.shape == (batch,)
    assert jnp.allclose(out, ref, atol=1e-5, rtol=1e-5), (out, ref)

    print("KERNEL_OK")
</pallas_src>

<mosaic_0001>
module attributes {stable_mosaic.version = 11 : i64} {
  func.func @cf_kernel(%arg0: i32, %arg1: memref<1x128xi32, #tpu.memory_space<vmem>>, %arg2: memref<1x128xi32, #tpu.memory_space<vmem>>, %arg3: memref<128x16xf32, #tpu.memory_space<vmem>>, %arg4: memref<128x24xf32, #tpu.memory_space<vmem>>, %arg5: memref<1x128xf32, #tpu.memory_space<vmem>>) attributes {dimension_semantics = [#tpu.dimension_semantics<parallel>], iteration_bounds = array<i64: 1>, scalar_prefetch = 0 : i64, scratch_operands = 0 : i64, tpu.core_type = #tpu.core_type<tc>, window_params = [{transform_indices = @transform_0, window_bounds = array<i64: 1, 128>}, {transform_indices = @transform_1, window_bounds = array<i64: 1, 128>}, {pipeline_mode = #tpu.pipeline_mode<synchronous>, transform_indices = @transform_2, window_bounds = array<i64: 128, 16>}, {pipeline_mode = #tpu.pipeline_mode<synchronous>, transform_indices = @transform_3, window_bounds = array<i64: 128, 24>}, {transform_indices = @transform_4, window_bounds = array<i64: 1, 128>}]} {
    %c0 = arith.constant 0 : index
    %c0_0 = arith.constant 0 : index
    %0 = vector.load %arg1[%c0, %c0_0] : memref<1x128xi32, #tpu.memory_space<vmem>>, vector<1x128xi32>
    %c0_1 = arith.constant 0 : index
    %c0_2 = arith.constant 0 : index
    %1 = vector.load %arg2[%c0_1, %c0_2] : memref<1x128xi32, #tpu.memory_space<vmem>>, vector<1x128xi32>
    %2 = tpu.iota {dimensions = array<i32: 0>} : vector<16x128xi32>
    %3 = vector.broadcast %0 : vector<1x128xi32> to vector<16x128xi32>
    %4 = arith.cmpi eq, %2, %3 : vector<16x128xi32>
    %5 = arith.extui %4 : vector<16x128xi1> to vector<16x128xi32>
    %6 = arith.sitofp %5 : vector<16x128xi32> to vector<16x128xf32>
    %7 = tpu.iota {dimensions = array<i32: 0>} : vector<24x128xi32>
    %8 = vector.broadcast %1 : vector<1x128xi32> to vector<24x128xi32>
    %9 = arith.cmpi eq, %7, %8 : vector<24x128xi32>
    %10 = arith.extui %9 : vector<24x128xi1> to vector<24x128xi32>
    %11 = arith.sitofp %10 : vector<24x128xi32> to vector<24x128xf32>
    %c0_3 = arith.constant 0 : index
    %c0_4 = arith.constant 0 : index
    %12 = vector.load %arg3[%c0_3, %c0_4] : memref<128x16xf32, #tpu.memory_space<vmem>>, vector<128x16xf32>
    %cst = arith.constant dense<0.000000e+00> : vector<128x128xf32>
    %13 = tpu.matmul %12, %6, %cst {dimension_numbers = #tpu.dot_dimension_numbers<[1], [0], [0], [1], [0, 0, 1, 1], [], []>} : vector<128x16xf32>, vector<16x128xf32>, vector<128x128xf32> -> vector<128x128xf32>
    %c0_5 = arith.constant 0 : index
    %c0_6 = arith.constant 0 : index
    %14 = vector.load %arg4[%c0_5, %c0_6] : memref<128x24xf32, #tpu.memory_space<vmem>>, vector<128x24xf32>
    %cst_7 = arith.constant dense<0.000000e+00> : vector<128x128xf32>
    %15 = tpu.matmul %14, %11, %cst_7 {dimension_numbers = #tpu.dot_dimension_numbers<[1], [0], [0], [1], [0, 0, 1, 1], [], []>} : vector<128x24xf32>, vector<24x128xf32>, vector<128x128xf32> -> vector<128x128xf32>
    %16 = arith.mulf %13, %15 : vector<128x128xf32>
    %cst_8 = arith.constant dense<0.000000e+00> : vector<128xf32>
    %17 = vector.multi_reduction <add>, %16, %cst_8 [0] : vector<128x128xf32> to vector<128xf32>
    %18 = vector.shape_cast %17 : vector<128xf32> to vector<1x128xf32>
    %19 = arith.negf %18 : vector<1x128xf32>
    %20 = math.exp %19 : vector<1x128xf32>
    %cst_9 = arith.constant 1.000000e+00 : f32
    %21 = vector.broadcast %cst_9 : f32 to vector<1x128xf32>
    %22 = arith.addf %21, %20 : vector<1x128xf32>
    %23 = arith.divf %21, %22 : vector<1x128xf32>
    %c0_10 = arith.constant 0 : index
    %c0_11 = arith.constant 0 : index
    %24 = vector.load %arg5[%c0_10, %c0_11] : memref<1x128xf32, #tpu.memory_space<vmem>>, vector<1x128xf32>
    tpu.vector_store %arg5[%c0_10, %c0_11], %23 {strides = array<i32>} : memref<1x128xf32, #tpu.memory_space<vmem>>, vector<1x128xf32>,
    return
  }
  func.func @transform_0(%arg0: i32) -> (i32, i32) {
    %c0_i32 = arith.constant 0 : i32
    %c0_i32_0 = arith.constant 0 : i32
    return %arg0, %c0_i32 : i32, i32
  }
  func.func @transform_1(%arg0: i32) -> (i32, i32) {
    %c0_i32 = arith.constant 0 : i32
    %c0_i32_0 = arith.constant 0 : i32
    return %arg0, %c0_i32 : i32, i32
  }
  func.func @transform_2(%arg0: i32) -> (i32, i32) {
    %c0_i32 = arith.constant 0 : i32
    %c0_i32_0 = arith.constant 0 : i32
    %c0_i32_1 = arith.constant 0 : i32
    return %c0_i32, %c0_i32_0 : i32, i32
  }
  func.func @transform_3(%arg0: i32) -> (i32, i32) {
    %c0_i32 = arith.constant 0 : i32
    %c0_i32_0 = arith.constant 0 : i32
    %c0_i32_1 = arith.constant 0 : i32
    return %c0_i32, %c0_i32_0 : i32, i32
  }
  func.func @transform_4(%arg0: i32) -> (i32, i32) {
    %c0_i32 = arith.constant 0 : i32
    %c0_i32_0 = arith.constant 0 : i32
    return %arg0, %c0_i32 : i32, i32
  }
}

</mosaic_0001>

<llo_original>
// kernel: tpu_custom_call.1
$region0: #{tpu_custom_call.1}
  #allocation0 [shape = 'u32[]', space=smem, size = 0x4, offset = 0x4, fixed_abs, tag = 'smem constant byte address 0x4 - core index']
  #allocation1 [shape = 'u32[144,128]{1,0:T(1,128)}', space=vmem, size = 0x12000, scoped, tag = 'internal scratch']
  %s0 = inlined_call_operand.vmem [shape: s32[1,128], index: 0, kind: input, shape index: {}]
  %s1 = inlined_call_operand.vmem [shape: s32[1,128], index: 1, kind: input, shape index: {}]
  %s2 = inlined_call_operand.vmem [shape: f32[128,16], index: 2, kind: input, shape index: {}]
  %s3 = inlined_call_operand.vmem [shape: f32[128,24], index: 3, kind: input, shape index: {}]
  %s4 = inlined_call_operand.hbm [shape: f32[1,128], index: 4, kind: output, shape index: {}]
  %s5 = sld [smem:[#allocation0]]
  $region26: #{tpu_custom_call.1} parent=0
    _
  %s7 = ssub.s32 1, %s5
  %s8 = scalar_select 0, %s7, %s5
  $region1: #{tpu_custom_call.1} parent=0
    #allocation2 [shape = 'u8[512]{0}', space=vmem, size = 0x400, scoped, tag = 'output window, operand 0, single buffered']
    #allocation3 [shape = 's32[1]{0}', space=sflag, size = 0x4, scoped, tag = 'scoped memory for tpu_custom_call.1']
    %9 = vsyncpa [#allocation3], 0
    // Predicated region
    $region2: #{tpu_custom_call.1} parent=1 // pred_check
      _
    $region3: #{tpu_custom_call.1} parent=1 // pred_check_branch
      %11 = sbr.rel (0) target = $region5
    $region4: #{tpu_custom_call.1} parent=1 // pred_region
      _
    $region5: #{tpu_custom_call.1} parent=1 // pred_fallthru
      _
    // Predicated region
    $region6: #{tpu_custom_call.1} parent=1 // pred_check
      _
    $region7: #{tpu_custom_call.1} parent=1 // pred_check_branch
      %13 = sbr.rel (0) target = $region9
    $region8: #{tpu_custom_call.1} parent=1 // pred_region
      _
    $region9: #{tpu_custom_call.1} parent=1 // pred_fallthru
      _
    // Predicated region
    $region10: #{tpu_custom_call.1} parent=1 // pred_check
      _
    $region11: #{tpu_custom_call.1} parent=1 // pred_check_branch
      %15 = sbr.rel (0) target = $region13
    $region12: #{tpu_custom_call.1} parent=1 // pred_region
      _
    $region13: #{tpu_custom_call.1} parent=1 // pred_fallthru
      _
    // Predicated region
    $region14: #{tpu_custom_call.1} parent=1 // pred_check
      _
    $region15: #{tpu_custom_call.1} parent=1 // pred_check_branch
      %17 = sbr.rel (0) target = $region17
    $region16: #{tpu_custom_call.1} parent=1 // pred_region
      _
    $region17: #{tpu_custom_call.1} parent=1 // pred_fallthru
      _
    %v18 = vld [vmem:[%s0] sm:$0x1]
    %v19 = vld [vmem:[%s1] sm:$0x1]
    %v20 = vlaneseq
    %v21 = vshrl.u32 %v20, 7
    %v22 = vadd.s32 %v21, 8
    %v23 = vlaneseq
    %v24 = vshrl.u32 %v23, 7
    %v25 = vsub.s32 0, %v24
    %v26 = vrot.slane %v18, %v25
    %vm27 = vcmp.eq.s32.totalorder %v21, %v26
    %vm28 = vcmp.eq.s32.totalorder %v22, %v26
    %v29 = vsel %vm27, 1, 0
    %v30 = vsel %vm28, 1, 0
    %v31 = vcvt.s32.f32 %v29
    %v32 = vcvt.s32.f32 %v30
    %v33 = vadd.s32 %v21, 16
    %v34 = vlaneseq
    %v35 = vshrl.u32 %v34, 7
    %v36 = vsub.s32 0, %v35
    %v37 = vrot.slane %v19, %v36
    %vm38 = vcmp.eq.s32.totalorder %v21, %v37
    %vm39 = vcmp.eq.s32.totalorder %v22, %v37
    %vm40 = vcmp.eq.s32.totalorder %v33, %v37
    %v41 = vsel %vm38, 1, 0
    %v42 = vsel %vm39, 1, 0
    %v43 = vsel %vm40, 1, 0
    %v44 = vcvt.s32.f32 %v41
    %v45 = vcvt.s32.f32 %v42
    %v46 = vcvt.s32.f32 %v43
    %v47 = vld [vmem:[%s2] sm:$0xff]
    %v48 = vld [vmem:[%s2 + $0x8] sm:$0xff]
    %v49 = vld [vmem:[%s2 + $0x10] sm:$0xff]
    %v50 = vld [vmem:[%s2 + $0x18] sm:$0xff]
    %v51 = vld [vmem:[%s2 + $0x20] sm:$0xff]
    %v52 = vld [vmem:[%s2 + $0x28] sm:$0xff]
    %v53 = vld [vmem:[%s2 + $0x30] sm:$0xff]
    %v54 = vld [vmem:[%s2 + $0x38] sm:$0xff]
    %v55 = vld [vmem:[%s2 + $0x40] sm:$0xff]
    %v56 = vld [vmem:[%s2 + $0x48] sm:$0xff]
    %v57 = vld [vmem:[%s2 + $0x50] sm:$0xff]
    %v58 = vld [vmem:[%s2 + $0x58] sm:$0xff]
    %v59 = vld [vmem:[%s2 + $0x60] sm:$0xff]
    %v60 = vld [vmem:[%s2 + $0x68] sm:$0xff]
    %v61 = vld [vmem:[%s2 + $0x70] sm:$0xff]
    %v62 = vld [vmem:[%s2 + $0x78] sm:$0xff]
    %vm63 = vcmask 130048
    %v65 = vsel %vm63, %v47, 0
    %v68 = vsel %vm63, %v48, 0
    %v71 = vsel %vm63, %v49, 0
    %v74 = vsel %vm63, %v50, 0
    %v77 = vsel %vm63, %v51, 0
    %v80 = vsel %vm63, %v52, 0
    %v83 = vsel %vm63, %v53, 0
    %v86 = vsel %vm63, %v54, 0
    %v89 = vsel %vm63, %v55, 0
    %v92 = vsel %vm63, %v56, 0
    %v95 = vsel %vm63, %v57, 0
    %v98 = vsel %vm63, %v58, 0
    %v101 = vsel %vm63, %v59, 0
    %v104 = vsel %vm63, %v60, 0
    %v107 = vsel %vm63, %v61, 0
    %v110 = vsel %vm63, %v62, 0
    %112 = vmatprep.subr.mxu0 0.0
    %113 = vmatpush1.msra.mxu0 %v31
    %114 = vmatprep.subr.mxu0 0.0
    %115 = vmatpush1.msra.mxu0 %v32
    %116 = vmatprep.subr.mxu0 0.0
    %117 = vmatpush1.msra.mxu0 0.0
    %118 = vmatprep.subr.mxu0 0.0
    %119 = vmatpush1.msra.mxu0 0.0
    %120 = vmatprep.subr.mxu0 0.0
    %121 = vmatpush1.msra.mxu0 0.0
    %122 = vmatprep.subr.mxu0 0.0
    %123 = vmatpush1.msra.mxu0 0.0
    %124 = vmatprep.subr.mxu0 0.0
    %125 = vmatpush1.msra.mxu0 0.0
    %126 = vmatprep.subr.mxu0 0.0
    %127 = vmatpush1.msra.mxu0 0.0
    %128 = vmatprep.subr.mxu0 0.0
    %129 = vmatpush1.msra.mxu0 0.0
    %130 = vmatprep.subr.mxu0 0.0
    %131 = vmatpush1.msra.mxu0 0.0
    %132 = vmatprep.subr.mxu0 0.0
    %133 = vmatpush1.msra.mxu0 0.0
    %134 = vmatprep.subr.mxu0 0.0
    %135 = vmatpush1.msra.mxu0 0.0
    %136 = vmatprep.subr.mxu0 0.0
    %137 = vmatpush1.msra.mxu0 0.0
    %138 = vmatprep.subr.mxu0 0.0
    %139 = vmatpush1.msra.mxu0 0.0
    %140 = vmatprep.subr.mxu0 0.0
    %141 = vmatpush1.msra.mxu0 0.0
    %142 = vmatprep.subr.mxu0 0.0
    %143 = vmatpush1.msra.mxu0 0.0
    %144 = vmatprep.subr.mxu0 0.0
    %145 = vmatpush1.msra.mxu0 0.0
    %146 = vmatprep.subr.mxu0 0.0
    %147 = vmatpush1.msra.mxu0 0.0
    %148 = vmatprep.subr.mxu0 0.0
    %149 = vmatpush1.msra.mxu0 0.0
    %150 = vmatprep.subr.mxu0 0.0
    %151 = vmatpush1.msra.mxu0 0.0
    %152 = vmatprep.subr.mxu0 0.0
    %153 = vmatpush1.msra.mxu0 0.0
    %154 = vmatprep.subr.mxu0 0.0
    %155 = vmatpush1.msra.mxu0 0.0
    %156 = vmatprep.subr.mxu0 0.0
    %157 = vmatpush1.msra.mxu0 0.0
    %158 = vmatprep.subr.mxu0 0.0
    %159 = vmatpush1.msra.mxu0 0.0
    %160 = vmatprep.subr.mxu0 0.0
    %161 = vmatpush1.msra.mxu0 0.0
    %162 = vmatprep.subr.mxu0 0.0
    %163 = vmatpush1.msra.mxu0 0.0
    %164 = vmatprep.subr.mxu0 0.0
    %165 = vmatpush1.msra.mxu0 0.0
    %166 = vmatprep.subr.mxu0 0.0
    %167 = vmatpush1.msra.mxu0 0.0
    %168 = vmatprep.subr.mxu0 0.0
    %169 = vmatpush1.msra.mxu0 0.0
    %170 = vmatprep.subr.mxu0 0.0
    %171 = vmatpush1.msra.mxu0 0.0
    %172 = vmatprep.subr.mxu0 0.0
    %173 = vmatpush1.msra.mxu0 0.0
    %174 = vmatprep.subr.mxu0 0.0
    %175 = vmatpush1.msra.mxu0 0.0
    %176 = vmatprep.mubr.f32.mxu0 0.0
    %177 = vmatmul.mubr.f32.gmra.mrb[0].mxu0 %v65
    %v178 = vpop.f32.mrb[0].mxu0
    %v179 = vadd.f32 0.0, %v178
    %v180 = vpop.f32.mrb[0].mxu0
    %181 = vmatprep.mubr.f32.mxu0 0.0
    %182 = vmatmul.mubr.f32.gmra.mrb[0].mxu0 %v68
    %v183 = vpop.f32.mrb[0].mxu0
    %v184 = vadd.f32 0.0, %v183
    %v185 = vpop.f32.mrb[0].mxu0
    %186 = vmatprep.mubr.f32.mxu0 0.0
    %187 = vmatmul.mubr.f32.gmra.mrb[0].mxu0 %v71
    %v188 = vpop.f32.mrb[0].mxu0
    %v189 = vadd.f32 0.0, %v188
    %v190 = vpop.f32.mrb[0].mxu0
    %191 = vmatprep.mubr.f32.mxu0 0.0
    %192 = vmatmul.mubr.f32.gmra.mrb[0].mxu0 %v74
    %v193 = vpop.f32.mrb[0].mxu0
    %v194 = vadd.f32 0.0, %v193
    %v195 = vpop.f32.mrb[0].mxu0
    %196 = vmatprep.mubr.f32.mxu0 0.0
    %197 = vmatmul.mubr.f32.gmra.mrb[0].mxu0 %v77
    %v198 = vpop.f32.mrb[0].mxu0
    %v199 = vadd.f32 0.0, %v198
    %v200 = vpop.f32.mrb[0].mxu0
    %201 = vmatprep.mubr.f32.mxu0 0.0
    %202 = vmatmul.mubr.f32.gmra.mrb[0].mxu0 %v80
    %v203 = vpop.f32.mrb[0].mxu0
    %v204 = vadd.f32 0.0, %v203
    %v205 = vpop.f32.mrb[0].mxu0
    %206 = vmatprep.mubr.f32.mxu0 0.0
    %207 = vmatmul.mubr.f32.gmra.mrb[0].mxu0 %v83
    %v208 = vpop.f32.mrb[0].mxu0
    %v209 = vadd.f32 0.0, %v208
    %v210 = vpop.f32.mrb[0].mxu0
    %211 = vmatprep.mubr.f32.mxu0 0.0
    %212 = vmatmul.mubr.f32.gmra.mrb[0].mxu0 %v86
    %v213 = vpop.f32.mrb[0].mxu0
    %v214 = vadd.f32 0.0, %v213
    %v215 = vpop.f32.mrb[0].mxu0
    %216 = vmatprep.mubr.f32.mxu0 0.0
    %217 = vmatmul.mubr.f32.gmra.mrb[0].mxu0 %v89
    %v218 = vpop.f32.mrb[0].mxu0
    %v219 = vadd.f32 0.0, %v218
    %v220 = vpop.f32.mrb[0].mxu0
    %221 = vmatprep.mubr.f32.mxu0 0.0
    %222 = vmatmul.mubr.f32.gmra.mrb[0].mxu0 %v92
    %v223 = vpop.f32.mrb[0].mxu0
    %v224 = vadd.f32 0.0, %v223
    %v225 = vpop.f32.mrb[0].mxu0
    %226 = vmatprep.mubr.f32.mxu0 0.0
    %227 = vmatmul.mubr.f32.gmra.mrb[0].mxu0 %v95
    %v228 = vpop.f32.mrb[0].mxu0
    %v229 = vadd.f32 0.0, %v228
    %v230 = vpop.f32.mrb[0].mxu0
    %231 = vmatprep.mubr.f32.mxu0 0.0
    %232 = vmatmul.mubr.f32.gmra.mrb[0].mxu0 %v98
    %v233 = vpop.f32.mrb[0].mxu0
    %v234 = vadd.f32 0.0, %v233
    %v235 = vpop.f32.mrb[0].mxu0
    %236 = vmatprep.mubr.f32.mxu0 0.0
    %237 = vmatmul.mubr.f32.gmra.mrb[0].mxu0 %v101
    %v238 = vpop.f32.mrb[0].mxu0
    %v239 = vadd.f32 0.0, %v238
    %v240 = vpop.f32.mrb[0].mxu0
    %241 = vmatprep.mubr.f32.mxu0 0.0
    %242 = vmatmul.mubr.f32.gmra.mrb[0].mxu0 %v104
    %v243 = vpop.f32.mrb[0].mxu0
    %v244 = vadd.f32 0.0, %v243
    %v245 = vpop.f32.mrb[0].mxu0
    %246 = vmatprep.mubr.f32.mxu0 0.0
    %247 = vmatmul.mubr.f32.gmra.mrb[0].mxu0 %v107
    %v248 = vpop.f32.mrb[0].mxu0
    %v249 = vadd.f32 0.0, %v248
    %v250 = vpop.f32.mrb[0].mxu0
    %251 = vmatprep.mubr.f32.mxu0 0.0
    %252 = vmatmul.mubr.f32.gmra.mrb[0].mxu0 %v110
    %v253 = vpop.f32.mrb[0].mxu0
    %v254 = vadd.f32 0.0, %v253
    %v255 = vpop.f32.mrb[0].mxu0
    %256 = vdwg.mxu0
    %v257 = vld [vmem:[%s3] sm:$0xff]
    %v258 = vld [vmem:[%s3 + $0x8] sm:$0xff]
    %v259 = vld [vmem:[%s3 + $0x10] sm:$0xff]
    %v260 = vld [vmem:[%s3 + $0x18] sm:$0xff]
    %v261 = vld [vmem:[%s3 + $0x20] sm:$0xff]
    %v262 = vld [vmem:[%s3 + $0x28] sm:$0xff]
    %v263 = vld [vmem:[%s3 + $0x30] sm:$0xff]
    %v264 = vld [vmem:[%s3 + $0x38] sm:$0xff]
    %v265 = vld [vmem:[%s3 + $0x40] sm:$0xff]
    %v266 = vld [vmem:[%s3 + $0x48] sm:$0xff]
    %v267 = vld [vmem:[%s3 + $0x50] sm:$0xff]
    %v268 = vld [vmem:[%s3 + $0x58] sm:$0xff]
    %v269 = vld [vmem:[%s3 + $0x60] sm:$0xff]
    %v270 = vld [vmem:[%s3 + $0x68] sm:$0xff]
    %v271 = vld [vmem:[%s3 + $0x70] sm:$0xff]
    %v272 = vld [vmem:[%s3 + $0x78] sm:$0xff]
    %vm273 = vcmask 195584
    %v275 = vsel %vm273, %v257, 0
    %v278 = vsel %vm273, %v258, 0
    %v281 = vsel %vm273, %v259, 0
    %v284 = vsel %vm273, %v260, 0
    %v287 = vsel %vm273, %v261, 0
    %v290 = vsel %vm273, %v262, 0
    %v293 = vsel %vm273, %v263, 0
    %v296 = vsel %vm273, %v264, 0
    %v299 = vsel %vm273, %v265, 0
    %v302 = vsel %vm273, %v266, 0
    %v305 = vsel %vm273, %v267, 0
    %v308 = vsel %vm273, %v268, 0
    %v311 = vsel %vm273, %v269, 0
    %v314 = vsel %vm273, %v270, 0
    %v317 = vsel %vm273, %v271, 0
    %v320 = vsel %vm273, %v272, 0
    %322 = vmatprep.subr.mxu0 0.0
    %323 = vmatpush1.msra.mxu0 %v44
    %324 = vmatprep.subr.mxu0 0.0
    %325 = vmatpush1.msra.mxu0 %v45
    %326 = vmatprep.subr.mxu0 0.0
    %327 = vmatpush1.msra.mxu0 %v46
    %328 = vmatprep.subr.mxu0 0.0
    %329 = vmatpush1.msra.mxu0 0.0
    %330 = vmatprep.subr.mxu0 0.0
    %331 = vmatpush1.msra.mxu0 0.0
    %332 = vmatprep.subr.mxu0 0.0
    %333 = vmatpush1.msra.mxu0 0.0
    %334 = vmatprep.subr.mxu0 0.0
    %335 = vmatpush1.msra.mxu0 0.0
    %336 = vmatprep.subr.mxu0 0.0
    %337 = vmatpush1.msra.mxu0 0.0
    %338 = vmatprep.subr.mxu0 0.0
    %339 = vmatpush1.msra.mxu0 0.0
    %340 = vmatprep.subr.mxu0 0.0
    %341 = vmatpush1.msra.mxu0 0.0
    %342 = vmatprep.subr.mxu0 0.0
    %343 = vmatpush1.msra.mxu0 0.0
    %344 = vmatprep.subr.mxu0 0.0
    %345 = vmatpush1.msra.mxu0 0.0
    %346 = vmatprep.subr.mxu0 0.0
    %347 = vmatpush1.msra.mxu0 0.0
    %348 = vmatprep.subr.mxu0 0.0
    %349 = vmatpush1.msra.mxu0 0.0
    %350 = vmatprep.subr.mxu0 0.0
    %351 = vmatpush1.msra.mxu0 0.0
    %352 = vmatprep.subr.mxu0 0.0
    %353 = vmatpush1.msra.mxu0 0.0
    %354 = vmatprep.subr.mxu0 0.0
    %355 = vmatpush1.msra.mxu0 0.0
    %356 = vmatprep.subr.mxu0 0.0
    %357 = vmatpush1.msra.mxu0 0.0
    %358 = vmatprep.subr.mxu0 0.0
    %359 = vmatpush1.msra.mxu0 0.0
    %360 = vmatprep.subr.mxu0 0.0
    %361 = vmatpush1.msra.mxu0 0.0
    %362 = vmatprep.subr.mxu0 0.0
    %363 = vmatpush1.msra.mxu0 0.0
    %364 = vmatprep.subr.mxu0 0.0
    %365 = vmatpush1.msra.mxu0 0.0
    %366 = vmatprep.subr.mxu0 0.0
    %367 = vmatpush1.msra.mxu0 0.0
    %368 = vmatprep.subr.mxu0 0.0
    %369 = vmatpush1.msra.mxu0 0.0
    %370 = vmatprep.subr.mxu0 0.0
    %371 = vmatpush1.msra.mxu0 0.0
    %372 = vmatprep.subr.mxu0 0.0
    %373 = vmatpush1.msra.mxu0 0.0
    %374 = vmatprep.subr.mxu0 0.0
    %375 = vmatpush1.msra.mxu0 0.0
    %376 = vmatprep.subr.mxu0 0.0
    %377 = vmatpush1.msra.mxu0 0.0
    %378 = vmatprep.subr.mxu0 0.0
    %379 = vmatpush1.msra.mxu0 0.0
    %380 = vmatprep.subr.mxu0 0.0
    %381 = vmatpush1.msra.mxu0 0.0
    %382 = vmatprep.subr.mxu0 0.0
    %383 = vmatpush1.msra.mxu0 0.0
    %384 = vmatprep.subr.mxu0 0.0
    %385 = vmatpush1.msra.mxu0 0.0
    %386 = vmatprep.mubr.f32.mxu0 0.0
    %387 = vmatmul.mubr.f32.gmra.mrb[0].mxu0 %v275
    %v388 = vpop.f32.mrb[0].mxu0
    %v389 = vadd.f32 0.0, %v388
    %v390 = vpop.f32.mrb[0].mxu0
    %391 = vmatprep.mubr.f32.mxu0 0.0
    %392 = vmatmul.mubr.f32.gmra.mrb[0].mxu0 %v278
    %v393 = vpop.f32.mrb[0].mxu0
    %v394 = vadd.f32 0.0, %v393
    %v395 = vpop.f32.mrb[0].mxu0
    %396 = vmatprep.mubr.f32.mxu0 0.0
    %397 = vmatmul.mubr.f32.gmra.mrb[0].mxu0 %v281
    %v398 = vpop.f32.mrb[0].mxu0
    %v399 = vadd.f32 0.0, %v398
    %v400 = vpop.f32.mrb[0].mxu0
    %401 = vmatprep.mubr.f32.mxu0 0.0
    %402 = vmatmul.mubr.f32.gmra.mrb[0].mxu0 %v284
    %v403 = vpop.f32.mrb[0].mxu0
    %v404 = vadd.f32 0.0, %v403
    %v405 = vpop.f32.mrb[0].mxu0
    %406 = vmatprep.mubr.f32.mxu0 0.0
    %407 = vmatmul.mubr.f32.gmra.mrb[0].mxu0 %v287
    %v408 = vpop.f32.mrb[0].mxu0
    %v409 = vadd.f32 0.0, %v408
    %v410 = vpop.f32.mrb[0].mxu0
    %411 = vmatprep.mubr.f32.mxu0 0.0
    %412 = vmatmul.mubr.f32.gmra.mrb[0].mxu0 %v290
    %v413 = vpop.f32.mrb[0].mxu0
    %v414 = vadd.f32 0.0, %v413
    %v415 = vpop.f32.mrb[0].mxu0
    %416 = vmatprep.mubr.f32.mxu0 0.0
    %417 = vmatmul.mubr.f32.gmra.mrb[0].mxu0 %v293
    %v418 = vpop.f32.mrb[0].mxu0
    %v419 = vadd.f32 0.0, %v418
    %v420 = vpop.f32.mrb[0].mxu0
    %421 = vmatprep.mubr.f32.mxu0 0.0
    %422 = vmatmul.mubr.f32.gmra.mrb[0].mxu0 %v296
    %v423 = vpop.f32.mrb[0].mxu0
    %v424 = vadd.f32 0.0, %v423
    %v425 = vpop.f32.mrb[0].mxu0
    %426 = vmatprep.mubr.f32.mxu0 0.0
    %427 = vmatmul.mubr.f32.gmra.mrb[0].mxu0 %v299
    %v428 = vpop.f32.mrb[0].mxu0
    %v429 = vadd.f32 0.0, %v428
    %v430 = vpop.f32.mrb[0].mxu0
    %431 = vmatprep.mubr.f32.mxu0 0.0
    %432 = vmatmul.mubr.f32.gmra.mrb[0].mxu0 %v302
    %v433 = vpop.f32.mrb[0].mxu0
    %v434 = vadd.f32 0.0, %v433
    %v435 = vpop.f32.mrb[0].mxu0
    %436 = vmatprep.mubr.f32.mxu0 0.0
    %437 = vmatmul.mubr.f32.gmra.mrb[0].mxu0 %v305
    %v438 = vpop.f32.mrb[0].mxu0
    %v439 = vadd.f32 0.0, %v438
    %v440 = vpop.f32.mrb[0].mxu0
    %441 = vmatprep.mubr.f32.mxu0 0.0
    %442 = vmatmul.mubr.f32.gmra.mrb[0].mxu0 %v308
    %v443 = vpop.f32.mrb[0].mxu0
    %v444 = vadd.f32 0.0, %v443
    %v445 = vpop.f32.mrb[0].mxu0
    %446 = vmatprep.mubr.f32.mxu0 0.0
    %447 = vmatmul.mubr.f32.gmra.mrb[0].mxu0 %v311
    %v448 = vpop.f32.mrb[0].mxu0
    %v449 = vadd.f32 0.0, %v448
    %v450 = vpop.f32.mrb[0].mxu0
    %451 = vmatprep.mubr.f32.mxu0 0.0
    %452 = vmatmul.mubr.f32.gmra.mrb[0].mxu0 %v314
    %v453 = vpop.f32.mrb[0].mxu0
    %v454 = vadd.f32 0.0, %v453
    %v455 = vpop.f32.mrb[0].mxu0
    %456 = vmatprep.mubr.f32.mxu0 0.0
    %457 = vmatmul.mubr.f32.gmra.mrb[0].mxu0 %v317
    %v458 = vpop.f32.mrb[0].mxu0
    %v459 = vadd.f32 0.0, %v458
    %v460 = vpop.f32.mrb[0].mxu0
    %461 = vmatprep.mubr.f32.mxu0 0.0
    %462 = vmatmul.mubr.f32.gmra.mrb[0].mxu0 %v320
    %v463 = vpop.f32.mrb[0].mxu0
    %v464 = vadd.f32 0.0, %v463
    %v465 = vpop.f32.mrb[0].mxu0
    %466 = vdwg.mxu0
    %v467 = vmul.f32 %v179, %v389
    %v468 = vmul.f32 %v184, %v394
    %v469 = vmul.f32 %v189, %v399
    %v470 = vmul.f32 %v194, %v404
    %v471 = vmul.f32 %v199, %v409
    %v472 = vmul.f32 %v204, %v414
    %v473 = vmul.f32 %v209, %v419
    %v474 = vmul.f32 %v214, %v424
    %v475 = vmul.f32 %v219, %v429
    %v476 = vmul.f32 %v224, %v434
    %v477 = vmul.f32 %v229, %v439
    %v478 = vmul.f32 %v234, %v444
    %v479 = vmul.f32 %v239, %v449
    %v480 = vmul.f32 %v244, %v454
    %v481 = vmul.f32 %v249, %v459
    %v482 = vmul.f32 %v254, %v464
    %v483 = vadd.f32 %v467, %v468
    %v484 = vadd.f32 %v483, %v469
    %v485 = vadd.f32 %v484, %v470
    %v486 = vadd.f32 %v485, %v471
    %v487 = vadd.f32 %v486, %v472
    %v488 = vadd.f32 %v487, %v473
    %v489 = vadd.f32 %v488, %v474
    %v490 = vadd.f32 %v489, %v475
    %v491 = vadd.f32 %v490, %v476
    %v492 = vadd.f32 %v491, %v477
    %v493 = vadd.f32 %v492, %v478
    %v494 = vadd.f32 %v493, %v479
    %v495 = vadd.f32 %v494, %v480
    %v496 = vadd.f32 %v495, %v481
    %v497 = vadd.f32 %v496, %v482
    %v498 = vrot.slane %v497, 4
    %v499 = vadd.f32 %v497, %v498
    %v500 = vrot.slane %v499, 2
    %v501 = vadd.f32 %v499, %v500
    %v502 = vrot.slane %v501, 1
    %v503 = vadd.f32 %v501, %v502
    %v504 = vxor.u32 %v503, 2147483648
    %v505 = vmul.f32 %v504, 1.442695
    %v506 = vpow.pop %v505
    %v507 = vadd.f32 %v506, 1.0
    %v508 = vrcp.pop %v507
    %v509 = vmul.f32 1.0, %v508
    %510 = vst [vmem:[#allocation2] sm:$0x1] %v509
    // Predicated region
    $region18: #{tpu_custom_call.1} parent=1 // pred_check
      _
    $region19: #{tpu_custom_call.1} parent=1 // pred_check_branch
      %512 = sbr.rel (0) target = $region21
    $region20: #{tpu_custom_call.1} parent=1 // pred_region
      %s514 = ssub.s32 16, 16
      %515 = vsyncadd [#allocation3], %s514
      %s517 = sshll.u32 [#allocation2], 4
      %s518 = int_to_ptr.vmem [resolvable:$true] %s517
      %520 = dma.vmem_to_hbm [thread:$0]  %s518, 16, %s4, [#allocation3]
    $region21: #{tpu_custom_call.1} parent=1 // pred_fallthru
      _
    // Predicated region
    $region22: #{tpu_custom_call.1} parent=1 // pred_check
      _
    $region23: #{tpu_custom_call.1} parent=1 // pred_check_branch
      %522 = sbr.rel (0) target = $region25
    $region24: #{tpu_custom_call.1} parent=1 // pred_region
      %523 = dma.done [#allocation3], 16
    $region25: #{tpu_custom_call.1} parent=1 // pred_fallthru
      _
    %524 = vsyncpa [#allocation3], 1

</llo_original>
